<compile_context>
chip_gen: v5e
topology: v5e:2x2
jax: 0.10.0
libtpu: 0.0.40
codegen_flags: <defaults>
</compile_context>

<pallas_src>
import functools

import jax
import jax.numpy as jnp
from jax.experimental import pallas as pl
from jax.experimental.pallas import tpu as pltpu


# ---------------------------------------------------------------------------
# Kernels
# ---------------------------------------------------------------------------

def _se_kernel_3d(x_ref, w1t_ref, b1_ref, w2t_ref, b2_ref, o_ref):
    """General path. x block (TB, C, HWp): C on sublanes, HWp on lanes."""
    xb = x_ref[...]
    # Global average pool as a sum over spatial (1/HW folded into w1t by the
    # wrapper); accumulate in f32 without an f32 copy of the whole block.
    pooled = jnp.sum(xb, axis=-1, dtype=jnp.float32)                    # (TB, C)
    # fc1 (1x1 conv == linear) + ReLU -- tiny, keep in f32.
    h = jnp.dot(pooled, w1t_ref[...], preferred_element_type=jnp.float32)
    h = jnp.maximum(h + b1_ref[...], 0.0)                               # (TB, Cr)
    # fc2 + sigmoid
    s = jnp.dot(h, w2t_ref[...], preferred_element_type=jnp.float32)
    s = jax.nn.sigmoid(s + b2_ref[...])                                 # (TB, C)
    # Channel-wise rescale in the input dtype; HWp is the lane axis.
    o_ref[...] = xb * s.astype(xb.dtype)[:, :, None]


def _se_kernel_packed(x_ref, w1t_ref, b1_ref, w2t_ref, b2_ref, o_ref, *, C, HWp):
    """Small-C path. x block (TB, C*HWp): batch on sublanes (dense), channels
    laid out as contiguous HWp-wide lane chunks (HWp is a multiple of 128, so
    every slice / store below is lane-aligned and unmasked)."""
    # Per-(sample, channel) pooled sums, accumulated in f32.
    cols = []
    for c in range(C):
        xc = x_ref[:, c * HWp:(c + 1) * HWp]                            # (TB, HWp)
        cols.append(jnp.sum(xc, axis=-1, keepdims=True, dtype=jnp.float32))
    pooled = jnp.concatenate(cols, axis=-1)                             # (TB, C)

    h = jnp.dot(pooled, w1t_ref[...], preferred_element_type=jnp.float32)
    h = jnp.maximum(h + b1_ref[...], 0.0)                               # (TB, Cr)
    s = jnp.dot(h, w2t_ref[...], preferred_element_type=jnp.float32)
    s = jax.nn.sigmoid(s + b2_ref[...])                                 # (TB, C)

    for c in range(C):
        xc = x_ref[:, c * HWp:(c + 1) * HWp]
        o_ref[:, c * HWp:(c + 1) * HWp] = xc * s[:, c:c + 1].astype(xc.dtype)


# ---------------------------------------------------------------------------
# Tiling / VMEM policy
# ---------------------------------------------------------------------------

def _vmem_budget_and_limit():
    """Generation-aware VMEM budget: ~96/80 MiB on 128-MiB parts (v5e/v6e),
    ~48/40 MiB on 64-MiB-per-TC parts (v7x); safe fallback otherwise."""
    try:
        cap = int(pltpu.get_tpu_info().vmem_capacity_bytes)
    except Exception:
        cap = 64 * 1024 * 1024  # conservative default (v7x per-TC size)
    limit = min(int(cap * 0.75), 100 * 1024 * 1024)
    budget = int(limit * 0.85)   # headroom for weights + compiler scratch
    return budget, limit


def _pick_batch_tile(B, row_bytes, budget, *, min_steps):
    """Largest batch tile whose 2(in)+2(out) double buffers fit `budget`,
    capped so the grid has at least `min_steps` steps.  No divides-B
    requirement: the trailing partial block is masked."""
    tb_vmem = budget // (4 * row_bytes)
    if tb_vmem < 1:
        # TODO(synk): implement the two-pass (HW-tiled pool + rescale) fallback.
        raise ValueError(
            f"one sample's flattened slab ({row_bytes} B) x 4 live buffers "
            f"exceeds the VMEM budget ({budget} B); a two-pass HW-tiled "
            f"kernel is required for this shape.")
    tb = min(tb_vmem, max(1, -(-B // min_steps)), B)
    return max(1, int(tb))


# ---------------------------------------------------------------------------
# Wrapper
# ---------------------------------------------------------------------------

def squeeze_and_excitation(x_nchw, w1, b1, w2, b2):
    """SE forward. x: (B, C, H, W); w1: (Cr, C); b1: (Cr,); w2: (C, Cr); b2: (C,)."""
    B, C, H, W = x_nchw.shape
    Cr = w1.shape[0]
    HW = H * W
    itemsize = jnp.dtype(x_nchw.dtype).itemsize

    # Lane-dense spatial axis: pad HW to a multiple of 128 when cheap.
    HWp = -(-HW // 128) * 128
    if HWp != HW and HWp > int(1.3 * HW):
        HWp = HW  # padding overhead too large relative to HW (e.g. 49 -> 128)

    x_flat = x_nchw.reshape(B, C, HW)
    if HWp != HW:
        # Zero padding: does not change the pooled sum; padded lanes rescale to 0.
        x_flat = jnp.pad(x_flat, ((0, 0), (0, 0), (0, HWp - HW)))

    # Fold the mean's 1/HW (TRUE HW, not HWp) into fc1's weight.
    w1t = w1.T.astype(jnp.float32) * jnp.float32(1.0 / HW)   # (C, Cr)
    w2t = w2.T.astype(jnp.float32)                           # (Cr, C)
    b1r = b1.reshape(1, Cr).astype(jnp.float32)
    b2r = b2.reshape(1, C).astype(jnp.float32)

    budget, vmem_limit = _vmem_budget_and_limit()
    row_bytes = C * HWp * itemsize
    min_steps = min(B, 4)  # >=2 steps enables pipelining / v7x megacore sharding

    # Small channel counts waste the 8-wide sublane axis of a (tb, C, HWp)
    # block; pack channels onto lanes instead.
    use_packed = (C * itemsize < 32) and (HWp % 128 == 0)

    tb = _pick_batch_tile(B, row_bytes, budget, min_steps=min_steps)
    if use_packed:
        # Batch sits on the sublane axis in the packed layout: the block's
        # second-to-last dim must be a multiple of 8 or equal to B.
        if tb % 8 != 0 and tb != B:
            tb8 = (tb // 8) * 8
            if tb8 >= 8:
                tb = tb8
            elif 4 * B * row_bytes <= budget:
                tb = B   # tiny batch: one (still tiny) full block; per-step
                         # overhead would dominate multiple steps anyway
            else:
                use_packed = False  # fall back to the 3-D layout

    cost = pl.CostEstimate(
        flops=2 * B * C * HW + 4 * B * C * Cr,
        transcendentals=B * C,
        bytes_accessed=2 * B * C * HWp * itemsize,
    )
    cparams = pltpu.CompilerParams(
        dimension_semantics=("parallel",),
        vmem_limit_bytes=vmem_limit,
    )
    grid = (pl.cdiv(B, tb),)

    if use_packed:
        x2 = x_flat.reshape(B, C * HWp)
        kernel = functools.partial(_se_kernel_packed, C=C, HWp=HWp)
        out2 = pl.pallas_call(
            kernel,
            out_shape=jax.ShapeDtypeStruct((B, C * HWp), x_nchw.dtype),
            grid=grid,
            in_specs=[
                pl.BlockSpec((tb, C * HWp), lambda i: (i, 0)),
                pl.BlockSpec((C, Cr), lambda i: (0, 0)),
                pl.BlockSpec((1, Cr), lambda i: (0, 0)),
                pl.BlockSpec((Cr, C), lambda i: (0, 0)),
                pl.BlockSpec((1, C), lambda i: (0, 0)),
            ],
            out_specs=pl.BlockSpec((tb, C * HWp), lambda i: (i, 0)),
            input_output_aliases={0: 0},
            compiler_params=cparams,
            cost_estimate=cost,
        )(x2, w1t, b1r, w2t, b2r)
        out_flat = out2.reshape(B, C, HWp)
    else:
        out_flat = pl.pallas_call(
            _se_kernel_3d,
            out_shape=jax.ShapeDtypeStruct((B, C, HWp), x_nchw.dtype),
            grid=grid,
            in_specs=[
                pl.BlockSpec((tb, C, HWp), lambda i: (i, 0, 0)),
                pl.BlockSpec((C, Cr), lambda i: (0, 0)),
                pl.BlockSpec((1, Cr), lambda i: (0, 0)),
                pl.BlockSpec((Cr, C), lambda i: (0, 0)),
                pl.BlockSpec((1, C), lambda i: (0, 0)),
            ],
            out_specs=pl.BlockSpec((tb, C, HWp), lambda i: (i, 0, 0)),
            input_output_aliases={0: 0},
            compiler_params=cparams,
            cost_estimate=cost,
        )(x_flat, w1t, b1r, w2t, b2r)

    if HWp != HW:
        out_flat = out_flat[:, :, :HW]
    return out_flat.reshape(B, C, H, W)


# ---------------------------------------------------------------------------
# Reference + demo
# ---------------------------------------------------------------------------

def _reference(x, w1, b1, w2, b2):
    pooled = jnp.mean(x, axis=(2, 3))                    # (B, C)
    h = jnp.maximum(pooled @ w1.T + b1, 0.0)             # (B, Cr)
    s = jax.nn.sigmoid(h @ w2.T + b2)                    # (B, C)
    return x * s[:, :, None, None]


if __name__ == "__main__":
    # Module config: channels=4, compression=1 -> Cr = 4
    B, C, H, W = 2, 4, 16, 16
    compression = 1
    Cr = C // compression

    key = jax.random.PRNGKey(0)
    kx, kw1, kb1, kw2, kb2 = jax.random.split(key, 5)

    x = jax.random.normal(kx, (B, C, H, W), dtype=jnp.float32)

    # Deterministic param init (Conv2d 1x1 == linear); kaiming-uniform-ish bounds.
    bound1 = 1.0 / (C ** 0.5)
    w1 = jax.random.uniform(kw1, (Cr, C), minval=-bound1, maxval=bound1, dtype=jnp.float32)
    b1 = jax.random.uniform(kb1, (Cr,), minval=-bound1, maxval=bound1, dtype=jnp.float32)
    bound2 = 1.0 / (Cr ** 0.5)
    w2 = jax.random.uniform(kw2, (C, Cr), minval=-bound2, maxval=bound2, dtype=jnp.float32)
    b2 = jax.random.uniform(kb2, (C,), minval=-bound2, maxval=bound2, dtype=jnp.float32)

    out = squeeze_and_excitation(x, w1, b1, w2, b2)
    out = jax.block_until_ready(out)

    ref = _reference(x, w1, b1, w2, b2)
    assert out.shape == (B, C, H, W)
    assert jnp.allclose(out, ref, atol=1e-5, rtol=1e-5), "mismatch vs reference"

    print("KERNEL_OK")
</pallas_src>

<mosaic_0001>
module attributes {stable_mosaic.version = 11 : i64} {
  func.func @_se_kernel_packed(%arg0: i32, %arg1: memref<2x1024xf32, #tpu.memory_space<vmem>>, %arg2: memref<4x4xf32, #tpu.memory_space<vmem>>, %arg3: memref<1x4xf32, #tpu.memory_space<vmem>>, %arg4: memref<4x4xf32, #tpu.memory_space<vmem>>, %arg5: memref<1x4xf32, #tpu.memory_space<vmem>>, %arg6: memref<2x1024xf32, #tpu.memory_space<vmem>>) attributes {dimension_semantics = [#tpu.dimension_semantics<parallel>], iteration_bounds = array<i64: 1>, scalar_prefetch = 0 : i64, scratch_operands = 0 : i64, tpu.core_type = #tpu.core_type<tc>, window_params = [{transform_indices = @transform_0, window_bounds = array<i64: 2, 1024>}, {pipeline_mode = #tpu.pipeline_mode<synchronous>, transform_indices = @transform_1, window_bounds = array<i64: 4, 4>}, {pipeline_mode = #tpu.pipeline_mode<synchronous>, transform_indices = @transform_2, window_bounds = array<i64: 1, 4>}, {pipeline_mode = #tpu.pipeline_mode<synchronous>, transform_indices = @transform_3, window_bounds = array<i64: 4, 4>}, {pipeline_mode = #tpu.pipeline_mode<synchronous>, transform_indices = @transform_4, window_bounds = array<i64: 1, 4>}, {transform_indices = @transform_5, window_bounds = array<i64: 2, 1024>}]} {
    %c0 = arith.constant 0 : index
    %c0_0 = arith.constant 0 : index
    %0 = vector.load %arg1[%c0, %c0_0] : memref<2x1024xf32, #tpu.memory_space<vmem>>, vector<2x256xf32>
    %cst = arith.constant dense<0.000000e+00> : vector<2xf32>
    %1 = vector.multi_reduction <add>, %0, %cst [1] : vector<2x256xf32> to vector<2xf32>
    %2 = vector.shape_cast %1 : vector<2xf32> to vector<2x1xf32>
    %c0_1 = arith.constant 0 : index
    %c256 = arith.constant 256 : index
    %3 = vector.load %arg1[%c0_1, %c256] : memref<2x1024xf32, #tpu.memory_space<vmem>>, vector<2x256xf32>
    %cst_2 = arith.constant dense<0.000000e+00> : vector<2xf32>
    %4 = vector.multi_reduction <add>, %3, %cst_2 [1] : vector<2x256xf32> to vector<2xf32>
    %5 = vector.shape_cast %4 : vector<2xf32> to vector<2x1xf32>
    %c0_3 = arith.constant 0 : index
    %c512 = arith.constant 512 : index
    %6 = vector.load %arg1[%c0_3, %c512] : memref<2x1024xf32, #tpu.memory_space<vmem>>, vector<2x256xf32>
    %cst_4 = arith.constant dense<0.000000e+00> : vector<2xf32>
    %7 = vector.multi_reduction <add>, %6, %cst_4 [1] : vector<2x256xf32> to vector<2xf32>
    %8 = vector.shape_cast %7 : vector<2xf32> to vector<2x1xf32>
    %c0_5 = arith.constant 0 : index
    %c768 = arith.constant 768 : index
    %9 = vector.load %arg1[%c0_5, %c768] : memref<2x1024xf32, #tpu.memory_space<vmem>>, vector<2x256xf32>
    %cst_6 = arith.constant dense<0.000000e+00> : vector<2xf32>
    %10 = vector.multi_reduction <add>, %9, %cst_6 [1] : vector<2x256xf32> to vector<2xf32>
    %11 = vector.shape_cast %10 : vector<2xf32> to vector<2x1xf32>
    %12 = tpu.concatenate %2, %5, %8, %11 in 1 : vector<2x1xf32>, vector<2x1xf32>, vector<2x1xf32>, vector<2x1xf32> -> vector<2x4xf32>
    %c0_7 = arith.constant 0 : index
    %c0_8 = arith.constant 0 : index
    %13 = vector.load %arg2[%c0_7, %c0_8] : memref<4x4xf32, #tpu.memory_space<vmem>>, vector<4x4xf32>
    %cst_9 = arith.constant dense<0.000000e+00> : vector<2x4xf32>
    %14 = tpu.matmul %12, %13, %cst_9 {dimension_numbers = #tpu.dot_dimension_numbers<[1], [0], [0], [1], [0, 0, 1, 1], [], []>} : vector<2x4xf32>, vector<4x4xf32>, vector<2x4xf32> -> vector<2x4xf32>
    %c0_10 = arith.constant 0 : index
    %c0_11 = arith.constant 0 : index
    %15 = vector.load %arg3[%c0_10, %c0_11] : memref<1x4xf32, #tpu.memory_space<vmem>>, vector<1x4xf32>
    %16 = vector.broadcast %15 : vector<1x4xf32> to vector<2x4xf32>
    %17 = arith.addf %14, %16 : vector<2x4xf32>
    %cst_12 = arith.constant 0.000000e+00 : f32
    %18 = vector.broadcast %cst_12 : f32 to vector<2x4xf32>
    %19 = arith.maximumf %17, %18 : vector<2x4xf32>
    %c0_13 = arith.constant 0 : index
    %c0_14 = arith.constant 0 : index
    %20 = vector.load %arg4[%c0_13, %c0_14] : memref<4x4xf32, #tpu.memory_space<vmem>>, vector<4x4xf32>
    %cst_15 = arith.constant dense<0.000000e+00> : vector<2x4xf32>
    %21 = tpu.matmul %19, %20, %cst_15 {dimension_numbers = #tpu.dot_dimension_numbers<[1], [0], [0], [1], [0, 0, 1, 1], [], []>} : vector<2x4xf32>, vector<4x4xf32>, vector<2x4xf32> -> vector<2x4xf32>
    %c0_16 = arith.constant 0 : index
    %c0_17 = arith.constant 0 : index
    %22 = vector.load %arg5[%c0_16, %c0_17] : memref<1x4xf32, #tpu.memory_space<vmem>>, vector<1x4xf32>
    %23 = vector.broadcast %22 : vector<1x4xf32> to vector<2x4xf32>
    %24 = arith.addf %21, %23 : vector<2x4xf32>
    %25 = arith.negf %24 : vector<2x4xf32>
    %26 = math.exp %25 : vector<2x4xf32>
    %cst_18 = arith.constant 1.000000e+00 : f32
    %27 = vector.broadcast %cst_18 : f32 to vector<2x4xf32>
    %28 = arith.addf %27, %26 : vector<2x4xf32>
    %29 = arith.divf %27, %28 : vector<2x4xf32>
    %c0_19 = arith.constant 0 : index
    %c0_20 = arith.constant 0 : index
    %30 = vector.load %arg1[%c0_19, %c0_20] : memref<2x1024xf32, #tpu.memory_space<vmem>>, vector<2x256xf32>
    %31 = vector.extract_strided_slice %29 {offsets = [0, 0], sizes = [2, 1], strides = [1, 1]} : vector<2x4xf32> to vector<2x1xf32>
    %32 = vector.broadcast %31 : vector<2x1xf32> to vector<2x256xf32>
    %33 = arith.mulf %30, %32 : vector<2x256xf32>
    %c0_21 = arith.constant 0 : index
    %c0_22 = arith.constant 0 : index
    %34 = vector.load %arg6[%c0_21, %c0_22] : memref<2x1024xf32, #tpu.memory_space<vmem>>, vector<2x256xf32>
    tpu.vector_store %arg6[%c0_21, %c0_22], %33 {strides = array<i32>} : memref<2x1024xf32, #tpu.memory_space<vmem>>, vector<2x256xf32>,
    %c0_23 = arith.constant 0 : index
    %c256_24 = arith.constant 256 : index
    %35 = vector.load %arg1[%c0_23, %c256_24] : memref<2x1024xf32, #tpu.memory_space<vmem>>, vector<2x256xf32>
    %36 = vector.extract_strided_slice %29 {offsets = [0, 1], sizes = [2, 1], strides = [1, 1]} : vector<2x4xf32> to vector<2x1xf32>
    %37 = vector.broadcast %36 : vector<2x1xf32> to vector<2x256xf32>
    %38 = arith.mulf %35, %37 : vector<2x256xf32>
    %c0_25 = arith.constant 0 : index
    %c256_26 = arith.constant 256 : index
    %39 = vector.load %arg6[%c0_25, %c256_26] : memref<2x1024xf32, #tpu.memory_space<vmem>>, vector<2x256xf32>
    tpu.vector_store %arg6[%c0_25, %c256_26], %38 {strides = array<i32>} : memref<2x1024xf32, #tpu.memory_space<vmem>>, vector<2x256xf32>,
    %c0_27 = arith.constant 0 : index
    %c512_28 = arith.constant 512 : index
    %40 = vector.load %arg1[%c0_27, %c512_28] : memref<2x1024xf32, #tpu.memory_space<vmem>>, vector<2x256xf32>
    %41 = vector.extract_strided_slice %29 {offsets = [0, 2], sizes = [2, 1], strides = [1, 1]} : vector<2x4xf32> to vector<2x1xf32>
    %42 = vector.broadcast %41 : vector<2x1xf32> to vector<2x256xf32>
    %43 = arith.mulf %40, %42 : vector<2x256xf32>
    %c0_29 = arith.constant 0 : index
    %c512_30 = arith.constant 512 : index
    %44 = vector.load %arg6[%c0_29, %c512_30] : memref<2x1024xf32, #tpu.memory_space<vmem>>, vector<2x256xf32>
    tpu.vector_store %arg6[%c0_29, %c512_30], %43 {strides = array<i32>} : memref<2x1024xf32, #tpu.memory_space<vmem>>, vector<2x256xf32>,
    %c0_31 = arith.constant 0 : index
    %c768_32 = arith.constant 768 : index
    %45 = vector.load %arg1[%c0_31, %c768_32] : memref<2x1024xf32, #tpu.memory_space<vmem>>, vector<2x256xf32>
    %46 = vector.extract_strided_slice %29 {offsets = [0, 3], sizes = [2, 1], strides = [1, 1]} : vector<2x4xf32> to vector<2x1xf32>
    %47 = vector.broadcast %46 : vector<2x1xf32> to vector<2x256xf32>
    %48 = arith.mulf %45, %47 : vector<2x256xf32>
    %c0_33 = arith.constant 0 : index
    %c768_34 = arith.constant 768 : index
    %49 = vector.load %arg6[%c0_33, %c768_34] : memref<2x1024xf32, #tpu.memory_space<vmem>>, vector<2x256xf32>
    tpu.vector_store %arg6[%c0_33, %c768_34], %48 {strides = array<i32>} : memref<2x1024xf32, #tpu.memory_space<vmem>>, vector<2x256xf32>,
    return
  }
  func.func @transform_0(%arg0: i32) -> (i32, i32) {
    %c0_i32 = arith.constant 0 : i32
    %c0_i32_0 = arith.constant 0 : i32
    return %arg0, %c0_i32 : i32, i32
  }
  func.func @transform_1(%arg0: i32) -> (i32, i32) {
    %c0_i32 = arith.constant 0 : i32
    %c0_i32_0 = arith.constant 0 : i32
    %c0_i32_1 = arith.constant 0 : i32
    return %c0_i32, %c0_i32_0 : i32, i32
  }
  func.func @transform_2(%arg0: i32) -> (i32, i32) {
    %c0_i32 = arith.constant 0 : i32
    %c0_i32_0 = arith.constant 0 : i32
    %c0_i32_1 = arith.constant 0 : i32
    return %c0_i32, %c0_i32_0 : i32, i32
  }
  func.func @transform_3(%arg0: i32) -> (i32, i32) {
    %c0_i32 = arith.constant 0 : i32
    %c0_i32_0 = arith.constant 0 : i32
    %c0_i32_1 = arith.constant 0 : i32
    return %c0_i32, %c0_i32_0 : i32, i32
  }
  func.func @transform_4(%arg0: i32) -> (i32, i32) {
    %c0_i32 = arith.constant 0 : i32
    %c0_i32_0 = arith.constant 0 : i32
    %c0_i32_1 = arith.constant 0 : i32
    return %c0_i32, %c0_i32_0 : i32, i32
  }
  func.func @transform_5(%arg0: i32) -> (i32, i32) {
    %c0_i32 = arith.constant 0 : i32
    %c0_i32_0 = arith.constant 0 : i32
    return %arg0, %c0_i32 : i32, i32
  }
}

</mosaic_0001>

<llo_original>
// kernel: tpu_custom_call.1
$region0: #{tpu_custom_call.1}
  #allocation0 [shape = 'u32[]', space=smem, size = 0x4, offset = 0x4, fixed_abs, tag = 'smem constant byte address 0x4 - core index']
  #allocation1 [shape = 'u32[72,128]{1,0:T(1,128)}', space=vmem, size = 0x9000, scoped, tag = 'internal scratch']
  %s0 = inlined_call_operand.hbm [shape: f32[2,1024], index: 0, kind: input, shape index: {}, may-alias: {0,5}]
  %s1 = inlined_call_operand.vmem [shape: f32[4,4], index: 1, kind: input, shape index: {}]
  %s2 = inlined_call_operand.vmem [shape: f32[1,4], index: 2, kind: input, shape index: {}]
  %s3 = inlined_call_operand.vmem [shape: f32[4,4], index: 3, kind: input, shape index: {}]
  %s4 = inlined_call_operand.vmem [shape: f32[1,4], index: 4, kind: input, shape index: {}]
  %s5 = inlined_call_operand.hbm [shape: f32[2,1024], index: 5, kind: output, shape index: {}, may-alias: {0,5}]
  %s6 = sld [smem:[#allocation0]]
  $region34: #{tpu_custom_call.1} parent=0
    _
  %s8 = ssub.s32 1, %s6
  %s9 = scalar_select 0, %s8, %s6
  $region1: #{tpu_custom_call.1} parent=0
    #allocation2 [shape = 'u8[8192]{0}', space=vmem, size = 0x2000, scoped, tag = 'input window, operand 0, single buffered']
    #allocation3 [shape = 's32[1]{0}', space=sflag, size = 0x4, scoped, tag = 'scoped memory for tpu_custom_call.1']
    #allocation4 [shape = 's32[1]{0}', space=sflag, size = 0x4, scoped, tag = 'scoped memory for tpu_custom_call.1']
    #allocation5 [shape = 'u8[8192]{0}', space=vmem, size = 0x2000, scoped, tag = 'output window, operand 0, single buffered']
    %10 = vsyncpa [#allocation3], 0
    %11 = vsyncpa [#allocation4], 0
    // Predicated region
    $region2: #{tpu_custom_call.1} parent=1 // pred_check
      _
    $region3: #{tpu_custom_call.1} parent=1 // pred_check_branch
      %13 = sbr.rel (0) target = $region5
    $region4: #{tpu_custom_call.1} parent=1 // pred_region
      %15 = vsyncadd [#allocation3], 0
      %s17 = sshll.u32 %s0, 4
      %s18 = int_to_ptr.hbm [resolvable:$true] %s17
      %s19 = sshll.u32 [#allocation2], 4
      %s20 = int_to_ptr.vmem [resolvable:$true] %s19
      %22 = dma.hbm_to_vmem [thread:$0]  %s18, 256, %s20, [#allocation3]
    $region5: #{tpu_custom_call.1} parent=1 // pred_fallthru
      _
    // Predicated region
    $region6: #{tpu_custom_call.1} parent=1 // pred_check
      _
    $region7: #{tpu_custom_call.1} parent=1 // pred_check_branch
      %24 = sbr.rel (0) target = $region9
    $region8: #{tpu_custom_call.1} parent=1 // pred_region
      _
    $region9: #{tpu_custom_call.1} parent=1 // pred_fallthru
      _
    // Predicated region
    $region10: #{tpu_custom_call.1} parent=1 // pred_check
      _
    $region11: #{tpu_custom_call.1} parent=1 // pred_check_branch
      %26 = sbr.rel (0) target = $region13
    $region12: #{tpu_custom_call.1} parent=1 // pred_region
      _
    $region13: #{tpu_custom_call.1} parent=1 // pred_fallthru
      _
    // Predicated region
    $region14: #{tpu_custom_call.1} parent=1 // pred_check
      _
    $region15: #{tpu_custom_call.1} parent=1 // pred_check_branch
      %28 = sbr.rel (0) target = $region17
    $region16: #{tpu_custom_call.1} parent=1 // pred_region
      _
    $region17: #{tpu_custom_call.1} parent=1 // pred_fallthru
      _
    // Predicated region
    $region18: #{tpu_custom_call.1} parent=1 // pred_check
      _
    $region19: #{tpu_custom_call.1} parent=1 // pred_check_branch
      %30 = sbr.rel (0) target = $region21
    $region20: #{tpu_custom_call.1} parent=1 // pred_region
      _
    $region21: #{tpu_custom_call.1} parent=1 // pred_fallthru
      _
    // Predicated region
    $region22: #{tpu_custom_call.1} parent=1 // pred_check
      _
    $region23: #{tpu_custom_call.1} parent=1 // pred_check_branch
      %32 = sbr.rel (0) target = $region25
    $region24: #{tpu_custom_call.1} parent=1 // pred_region
      %34 = dma.done [#allocation3], 256
    $region25: #{tpu_custom_call.1} parent=1 // pred_fallthru
      _
    %v35 = vld [vmem:[#allocation2] sm:$0xf]
    %37 = vst [vmem:[#allocation1] ss:$4 sm:$0xff] %v35
    %v38 = vld.sshfl [vmem:[#allocation1] sm:$0xff pattern:$0x73625140]
    %v39 = vld.sshfl [vmem:[#allocation1 + $0x8] sm:$0xff pattern:$0x73625140]
    %vm42 = vcmask 1041408
    %v43 = vsel %vm42, %v38, 0.0
    %v44 = vsel %vm42, %v39, 0.0
    %v45 = vadd.f32 %v43, %v44
    %46 = vadd.xlane.f32.xlu0 %v45
    %v47 = vpop.xlane.xlu0 %46
    %v48 = vld [vmem:[#allocation2 + $0x4] sm:$0xf]
    %50 = vst [vmem:[#allocation1] ss:$4 sm:$0xff] %v48
    %v51 = vld.sshfl [vmem:[#allocation1] sm:$0xff pattern:$0x73625140]
    %v52 = vld.sshfl [vmem:[#allocation1 + $0x8] sm:$0xff pattern:$0x73625140]
    %v55 = vsel %vm42, %v51, 0.0
    %v56 = vsel %vm42, %v52, 0.0
    %v57 = vadd.f32 %v55, %v56
    %58 = vadd.xlane.f32.xlu0 %v57
    %v59 = vpop.xlane.xlu0 %58
    %v60 = vld [vmem:[#allocation2 + $0x8] sm:$0xf]
    %62 = vst [vmem:[#allocation1] ss:$4 sm:$0xff] %v60
    %v63 = vld.sshfl [vmem:[#allocation1] sm:$0xff pattern:$0x73625140]
    %v64 = vld.sshfl [vmem:[#allocation1 + $0x8] sm:$0xff pattern:$0x73625140]
    %v67 = vsel %vm42, %v63, 0.0
    %v68 = vsel %vm42, %v64, 0.0
    %v69 = vadd.f32 %v67, %v68
    %70 = vadd.xlane.f32.xlu0 %v69
    %v71 = vpop.xlane.xlu0 %70
    %v72 = vld [vmem:[#allocation2 + $0xc] sm:$0xf]
    %74 = vst [vmem:[#allocation1] ss:$4 sm:$0xff] %v72
    %v75 = vld.sshfl [vmem:[#allocation1] sm:$0xff pattern:$0x73625140]
    %v76 = vld.sshfl [vmem:[#allocation1 + $0x8] sm:$0xff pattern:$0x73625140]
    %v79 = vsel %vm42, %v75, 0.0
    %v80 = vsel %vm42, %v76, 0.0
    %v81 = vadd.f32 %v79, %v80
    %82 = vadd.xlane.f32.xlu0 %v81
    %v83 = vpop.xlane.xlu0 %82
    %vm84 = vcmask 7168
    %v85 = vsel %vm84, %v47, %v59
    %vm86 = vcmask 15360
    %v87 = vsel %vm86, %v85, %v71
    %vm88 = vcmask 23552
    %v89 = vsel %vm88, %v87, %v83
    %v90 = vld [vmem:[%s1] sm:$0xf]
    %v91 = vld [vmem:[%s2] sm:$0x1]
    %v93 = vperm.slane %v91, 0
    %vm95 = vcmask 31744
    %v97 = vsel %vm95, %v89, 0
    %vm99 = vcmask 1043456
    %v101 = vsel %vm99, %v90, 0
    %103 = vmatpush.msra.mxu0 0.0
    %104 = vmatpush.msra.mxu0 0.0
    %105 = vmatpush.msra.mxu0 0.0
    %106 = vmatpush.msra.mxu0 0.0
    %107 = vmatpush.msra.mxu0 0.0
    %108 = vmatpush.msra.mxu0 0.0
    %109 = vmatpush.msra.mxu0 0.0
    %110 = vmatpush.msra.mxu0 0.0
    %111 = vmatpush.msra.mxu0 0.0
    %112 = vmatpush.msra.mxu0 0.0
    %113 = vmatpush.msra.mxu0 0.0
    %114 = vmatpush.msra.mxu0 0.0
    %115 = vmatpush.msra.mxu0 0.0
    %116 = vmatpush.msra.mxu0 0.0
    %117 = vmatpush.msra.mxu0 0.0
    %118 = vmatpush.msra.mxu0 %v101
    %119 = vmatmul.f32.gmra.mxu0 %v97
    %v120 = vpop.f32.mrf.mxu0
    %v121 = vadd.f32 %v93, %v120
    %122 = vdwg.mxu0
    %v123 = vmax.f32 %v121, 0.0
    %v124 = vld [vmem:[%s3] sm:$0xf]
    %v125 = vld [vmem:[%s4] sm:$0x1]
    %v127 = vperm.slane %v125, 0
    %v130 = vsel %vm95, %v123, 0
    %v133 = vsel %vm99, %v124, 0
    %135 = vmatpush.msra.mxu0 0.0
    %136 = vmatpush.msra.mxu0 0.0
    %137 = vmatpush.msra.mxu0 0.0
    %138 = vmatpush.msra.mxu0 0.0
    %139 = vmatpush.msra.mxu0 0.0
    %140 = vmatpush.msra.mxu0 0.0
    %141 = vmatpush.msra.mxu0 0.0
    %142 = vmatpush.msra.mxu0 0.0
    %143 = vmatpush.msra.mxu0 0.0
    %144 = vmatpush.msra.mxu0 0.0
    %145 = vmatpush.msra.mxu0 0.0
    %146 = vmatpush.msra.mxu0 0.0
    %147 = vmatpush.msra.mxu0 0.0
    %148 = vmatpush.msra.mxu0 0.0
    %149 = vmatpush.msra.mxu0 0.0
    %150 = vmatpush.msra.mxu0 %v133
    %151 = vmatmul.f32.gmra.mxu0 %v130
    %v152 = vpop.f32.mrf.mxu0
    %v153 = vadd.f32 %v127, %v152
    %154 = vdwg.mxu0
    %v155 = vxor.u32 %v153, 2147483648
    %v156 = vmul.f32 %v155, 1.442695
    %v157 = vpow.pop %v156
    %v158 = vadd.f32 %v157, 1.0
    %v159 = vrcp.pop %v158
    %v160 = vmul.f32 %v158, %v159
    %v161 = vsub.f32 1.0, %v160
    %v162 = vmul.f32 %v159, %v161
    %v163 = vadd.f32 %v159, %v162
    %vm164 = vweird.f32 %v158
    %vm165 = vweird.f32 %v159
    %vm166 = vmor %vm164, %vm165
    %v167 = vsel %vm166, %v159, %v163
    %v168 = vand.u32 2147483647, %v158
    %vm169 = vcmp.eq.f32.partialorder %v168, 8.507059e+37
    %v170 = vand.u32 %v158, 2147483648
    %v171 = vor.u32 1.1754944e-38, %v170
    %v172 = vsel %vm169, %v171, %v167
    %v173 = vmul.f32 1.0, %v172
    %175 = vset.pattern.permute.xlu0 0
    %176 = vperm.xlu0 %175, %v173
    %v177 = vpop.permute.xlu0 %176
    %v179 = vunpack.c.l.s4 269488144
    %v180 = vunpack.c.0.s8 %v179
    %v181 = vperm.slane %v177, %v180
    %v183 = vmul.f32 %v35, %v181
    %184 = vst [vmem:[#allocation5] sm:$0xf] %v183
    %v185 = vld [vmem:[#allocation2 + $0x4] sm:$0xf]
    %186 = vset.pattern.permute.xlu0 1
    %187 = vperm.xlu0 %186, %v173
    %v188 = vpop.permute.xlu0 %187
    %v190 = vunpack.c.l.s4 269488144
    %v191 = vunpack.c.0.s8 %v190
    %v192 = vperm.slane %v188, %v191
    %v194 = vmul.f32 %v185, %v192
    %195 = vst [vmem:[#allocation5 + $0x4] sm:$0xf] %v194
    %v196 = vld [vmem:[#allocation2 + $0x8] sm:$0xf]
    %197 = vset.pattern.permute.xlu0 2
    %198 = vperm.xlu0 %197, %v173
    %v199 = vpop.permute.xlu0 %198
    %v201 = vunpack.c.l.s4 269488144
    %v202 = vunpack.c.0.s8 %v201
    %v203 = vperm.slane %v199, %v202
    %v205 = vmul.f32 %v196, %v203
    %206 = vst [vmem:[#allocation5 + $0x8] sm:$0xf] %v205
    %v207 = vld [vmem:[#allocation2 + $0xc] sm:$0xf]
    %208 = vset.pattern.permute.xlu0 3
    %209 = vperm.xlu0 %208, %v173
    %v210 = vpop.permute.xlu0 %209
    %v212 = vunpack.c.l.s4 269488144
    %v213 = vunpack.c.0.s8 %v212
    %v214 = vperm.slane %v210, %v213
    %v216 = vmul.f32 %v207, %v214
    %217 = vst [vmem:[#allocation5 + $0xc] sm:$0xf] %v216
    // Predicated region
    $region26: #{tpu_custom_call.1} parent=1 // pred_check
      _
    $region27: #{tpu_custom_call.1} parent=1 // pred_check_branch
      %219 = sbr.rel (0) target = $region29
    $region28: #{tpu_custom_call.1} parent=1 // pred_region
      %221 = vsyncadd [#allocation4], 0
      %s223 = sshll.u32 [#allocation5], 4
      %s224 = int_to_ptr.vmem [resolvable:$true] %s223
      %s225 = sshll.u32 %s5, 4
      %s226 = int_to_ptr.hbm [resolvable:$true] %s225
      %228 = dma.vmem_to_hbm [thread:$0]  %s224, 256, %s226, [#allocation4]
    $region29: #{tpu_custom_call.1} parent=1 // pred_fallthru
      _
    // Predicated region
    $region30: #{tpu_custom_call.1} parent=1 // pred_check
      _
    $region31: #{tpu_custom_call.1} parent=1 // pred_check_branch
      %230 = sbr.rel (0) target = $region33
    $region32: #{tpu_custom_call.1} parent=1 // pred_region
      %232 = dma.done [#allocation4], 256
    $region33: #{tpu_custom_call.1} parent=1 // pred_fallthru
      _
    %233 = vsyncpa [#allocation3], 1
    %234 = vsyncpa [#allocation4], 1

</llo_original>
